<compile_context>
chip_gen: v7x
topology: tpu7x:2x2x1
jax: 0.10.0
libtpu: 0.0.40
codegen_flags: <defaults>
</compile_context>

<pallas_src>
import functools

import numpy as np
import jax
import jax.numpy as jnp
from jax.experimental import pallas as pl
from jax.experimental.pallas import tpu as pltpu

_LANE = 128


def _round_up(v, m):
    return (v + m - 1) // m * m


def _vmem_budget():
    """Returns (input-tile byte budget, scoped vmem limit) per TPU generation."""
    try:
        cap = int(pltpu.get_tpu_info().vmem_capacity_bytes)
    except Exception:
        cap = 64 << 20                         # be conservative (v7x per-TC VMEM)
    if cap >= (100 << 20):                     # v5e / v6e: 128 MiB physical VMEM
        return 48 << 20, 96 << 20
    return 20 << 20, 40 << 20                  # v7x: 64 MiB per TensorCore


def _masked_rowsum_kernel(a_ref, x_ref, o_ref, *, dilation, l_tile, length, tail):
    """Grid: (cdiv(L, l_tile),), parallel. Emits per-row sums of distance-masked x."""
    x = x_ref[...]                                        # (BC, l_tile) f32
    a = a_ref[...].astype(jnp.int32)                      # sign-extend 8-bit distances
    # (A > dilation) | (A == -1)  ==  unsigned(A) > dilation   (distances >= -1)
    mask = pltpu.bitcast(a, jnp.uint32) > jnp.uint32(dilation)
    if tail:  # static: L not a multiple of l_tile -> kill out-of-range lanes
        lane = jax.lax.broadcasted_iota(jnp.int32, x.shape, 1)
        mask = jnp.logical_and(mask, lane < (length - pl.program_id(0) * l_tile))
    xm = jnp.where(mask, x, 0.0)
    # Per-step cross-lane reduce (XLU slot); each grid step owns its own output row.
    o_ref[...] = jnp.sum(xm, axis=-1)[None, None, :]      # (1, 1, BC)


def _conv_bn_relu_kernel(s_ref, w_ref, bias_ref, gamma_ref, beta_ref, o_ref, *, eps):
    """Single-step epilogue: 1x1 conv (as matmul) + bias + BN(train) + ReLU."""
    # conv1x1(masked x) summed over L == (sum_L masked_x) @ W^T  (linear ops commute).
    y = jnp.dot(s_ref[...], w_ref[...], preferred_element_type=jnp.float32)
    y = y + bias_ref[...]                                  # per-channel bias
    mean = jnp.mean(y, axis=0, keepdims=True)              # training-mode batch stats
    var = jnp.mean((y - mean) ** 2, axis=0, keepdims=True)  # biased var (torch BN)
    scale = gamma_ref[...] * jax.lax.rsqrt(var + eps)       # rsqrt -> EUP
    shift = beta_ref[...] - mean * scale
    o_ref[...] = jnp.maximum(y * scale + shift, 0.0)


def distconv_forward(A, x, conv_weight, bias, gamma, beta, *,
                     dilation=1, eps=1e-5, l_tile=None):
    """A, x: (B, Cin, L); conv_weight: (Cout, Cin, 1); bias/gamma/beta: (Cout,).

    Returns {'graph': A, 'features': (B, Cout) f32}, matching DistConv.forward
    with training-mode BatchNorm statistics. Distances in A are assumed >= -1.
    """
    # TODO(synk): BatchNorm1d running_mean/running_var updates (training-mode
    # module side effect) are not produced; only the forward output is computed.

    B, Cin, L = x.shape
    Cout = conv_weight.shape[0]
    BC = B * Cin

    x32 = x if x.dtype == jnp.float32 else x.astype(jnp.float32)
    # Stream A as 8-bit. If it already arrives as int8/uint8 there is no extra
    # HBM pass; otherwise this cast is one (unavoidable) extra XLA pass.
    if A.dtype == jnp.int8 or A.dtype == jnp.uint8:
        a8 = A
    else:
        a8 = A.astype(jnp.int8)

    # Collapse (B, Cin) -> one dense sublane axis (cheap view of contiguous data).
    x2 = x32.reshape(BC, L)
    a2 = a8.reshape(BC, L)

    budget, vmem_limit = _vmem_budget()
    if l_tile is None:
        rows_f32 = _round_up(BC, 8)                  # f32 sublane tile
        rows_i8 = _round_up(BC, 32)                  # int8 sublane tile
        per_l = 2 * (rows_f32 * 4 + rows_i8)         # double-buffered x + A bytes / column
        l_tile = max(_LANE, (budget // per_l) // _LANE * _LANE)
        l_tile = min(l_tile, _round_up(L, _LANE))
    assert l_tile % _LANE == 0
    n_l = (L + l_tile - 1) // l_tile                 # cdiv grid, no wrapper-side padding
    tail = (L % l_tile) != 0

    kernel1 = functools.partial(_masked_rowsum_kernel, dilation=int(dilation),
                                l_tile=int(l_tile), length=int(L), tail=bool(tail))
    cost1 = pl.CostEstimate(
        flops=4 * BC * L,
        transcendentals=0,
        bytes_accessed=BC * L * 5 + n_l * BC * 4,
    )

    partials = pl.pallas_call(
        kernel1,
        out_shape=jax.ShapeDtypeStruct((n_l, 1, BC), jnp.float32),
        grid_spec=pltpu.PrefetchScalarGridSpec(
            num_scalar_prefetch=0,
            grid=(n_l,),
            in_specs=[
                pl.BlockSpec((BC, l_tile), lambda l: (0, l)),   # A (int8)
                pl.BlockSpec((BC, l_tile), lambda l: (0, l)),   # x (f32)
            ],
            out_specs=pl.BlockSpec((1, 1, BC), lambda l: (l, 0, 0)),
        ),
        compiler_params=pltpu.CompilerParams(
            dimension_semantics=("parallel",),   # pure map -> megacore-splittable on v7x
            vmem_limit_bytes=vmem_limit,
        ),
        cost_estimate=cost1,
    )(a2, x2)

    # Tiny combine of the per-block partial sums: O(B*Cin) work vs. the L stream.
    s = jnp.sum(partials, axis=(0, 1)).reshape(B, Cin)

    # Epilogue: 1x1-conv matmul + bias + BatchNorm(train) + ReLU, Cout lane-padded.
    Cout_pad = _round_up(Cout, _LANE)
    w_t = conv_weight[:, :, 0].T.astype(jnp.float32)                       # (Cin, Cout)
    w_t = jnp.pad(w_t, ((0, 0), (0, Cout_pad - Cout)))
    bias2 = jnp.pad(bias.astype(jnp.float32), (0, Cout_pad - Cout)).reshape(1, Cout_pad)
    gamma2 = jnp.pad(gamma.astype(jnp.float32), (0, Cout_pad - Cout)).reshape(1, Cout_pad)
    beta2 = jnp.pad(beta.astype(jnp.float32), (0, Cout_pad - Cout)).reshape(1, Cout_pad)

    feats = pl.pallas_call(
        functools.partial(_conv_bn_relu_kernel, eps=float(eps)),
        out_shape=jax.ShapeDtypeStruct((B, Cout_pad), jnp.float32),
    )(s, w_t, bias2, gamma2, beta2)

    return {'graph': A, 'features': feats[:, :Cout]}


def _ref_forward(A, x, conv_weight, bias, gamma, beta, dilation, eps):
    """float64 NumPy reference of DistConv.forward (training-mode BN)."""
    A = np.asarray(A)
    x = np.asarray(x, np.float64)
    w = np.asarray(conv_weight, np.float64)[:, :, 0]             # (Cout, Cin)
    mask = (A > dilation) | (A == -1)
    xm = np.where(mask, x, 0.0)
    y = np.einsum('oc,bcl->bo', w, xm) + np.asarray(bias, np.float64)
    mean = y.mean(axis=0)
    var = ((y - mean) ** 2).mean(axis=0)                         # biased, as torch BN
    y_hat = (y - mean) / np.sqrt(var + eps)
    return np.maximum(y_hat * np.asarray(gamma, np.float64) + np.asarray(beta, np.float64), 0.0)


if __name__ == "__main__":
    B, NIN, NOUT = 2, 4, 8
    dilation = 1

    key = jax.random.PRNGKey(0)
    k_w, k_a1, k_x1, k_a2, k_x2, k_a3, k_x3 = jax.random.split(key, 7)

    conv_weight = 0.1 * jax.random.normal(k_w, (NOUT, NIN, 1), dtype=jnp.float32)
    bias = jnp.zeros((NOUT,), dtype=jnp.float32)      # nn.Parameter(torch.zeros(nout))
    gamma = jnp.ones((NOUT,), dtype=jnp.float32)      # BatchNorm1d weight
    beta = jnp.zeros((NOUT,), dtype=jnp.float32)      # BatchNorm1d bias

    def run_case(k_a, k_x, L, l_tile=None):
        # Graph distances supplied as int8 upstream (no wrapper cast pass).
        A = jax.random.randint(k_a, (B, NIN, L), minval=-1, maxval=4).astype(jnp.int8)
        x = jax.random.normal(k_x, (B, NIN, L), dtype=jnp.float32)
        out = distconv_forward(A, x, conv_weight, bias, gamma, beta,
                               dilation=dilation, l_tile=l_tile)
        feats = jax.block_until_ready(out['features'])
        assert feats.shape == (B, NOUT)
        ref = _ref_forward(A, x, conv_weight, bias, gamma, beta, dilation, 1e-5)
        np.testing.assert_allclose(np.asarray(feats), ref, rtol=1e-2, atol=1e-2)

    # Case 1: L = 256, forced tile 128 -> 2-step parallel grid, no tail mask.
    run_case(k_a1, k_x1, L=256, l_tile=128)
    # Case 2: ragged L = 16 -> single partial block, in-kernel tail mask.
    run_case(k_a2, k_x2, L=16)
    # Case 3: multi-step grid AND ragged tail (L=200, tile 128 -> 2 steps, 72-lane tail).
    run_case(k_a3, k_x3, L=200, l_tile=128)

    print("KERNEL_OK")
</pallas_src>

<mosaic_0001>
module attributes {stable_mosaic.version = 11 : i64} {
  func.func @_masked_rowsum_kernel(%arg0: i32, %arg1: memref<8x128xi8, #tpu.memory_space<vmem>>, %arg2: memref<8x128xf32, #tpu.memory_space<vmem>>, %arg3: memref<1x1x8xf32, #tpu.memory_space<vmem>>) attributes {dimension_semantics = [#tpu.dimension_semantics<parallel>], iteration_bounds = array<i64: 2>, scalar_prefetch = 0 : i64, scratch_operands = 0 : i64, tpu.core_type = #tpu.core_type<tc>, window_params = [{transform_indices = @transform_0, window_bounds = array<i64: 8, 128>}, {transform_indices = @transform_1, window_bounds = array<i64: 8, 128>}, {transform_indices = @transform_2, window_bounds = array<i64: 1, 1, 8>}]} {
    %c0 = arith.constant 0 : index
    %c0_0 = arith.constant 0 : index
    %0 = vector.load %arg2[%c0, %c0_0] : memref<8x128xf32, #tpu.memory_space<vmem>>, vector<8x128xf32>
    %c0_1 = arith.constant 0 : index
    %c0_2 = arith.constant 0 : index
    %1 = vector.load %arg1[%c0_1, %c0_2] : memref<8x128xi8, #tpu.memory_space<vmem>>, vector<8x128xi8>
    %2 = arith.extsi %1 : vector<8x128xi8> to vector<8x128xi32>
    %3 = tpu.bitcast %2 : vector<8x128xi32> -> vector<8x128xi32>
    %c1_i32 = arith.constant 1 : i32
    %4 = vector.broadcast %c1_i32 : i32 to vector<8x128xi32>
    %5 = arith.cmpi ugt, %3, %4 : vector<8x128xi32>
    %cst = arith.constant 0.000000e+00 : f32
    %6 = vector.broadcast %cst : f32 to vector<8x128xf32>
    %7 = arith.select %5, %0, %6 : vector<8x128xi1>, vector<8x128xf32>
    %cst_3 = arith.constant dense<0.000000e+00> : vector<8xf32>
    %8 = vector.multi_reduction <add>, %7, %cst_3 [1] : vector<8x128xf32> to vector<8xf32>
    %9 = vector.shape_cast %8 : vector<8xf32> to vector<1x1x8xf32>
    %c0_4 = arith.constant 0 : index
    %c0_5 = arith.constant 0 : index
    %c0_6 = arith.constant 0 : index
    %10 = vector.load %arg3[%c0_4, %c0_5, %c0_6] : memref<1x1x8xf32, #tpu.memory_space<vmem>>, vector<1x1x8xf32>
    tpu.vector_store %arg3[%c0_4, %c0_5, %c0_6], %9 {strides = array<i32>} : memref<1x1x8xf32, #tpu.memory_space<vmem>>, vector<1x1x8xf32>,
    return
  }
  func.func @transform_0(%arg0: i32) -> (i32, i32) {
    %c0_i32 = arith.constant 0 : i32
    %c0_i32_0 = arith.constant 0 : i32
    return %c0_i32, %arg0 : i32, i32
  }
  func.func @transform_1(%arg0: i32) -> (i32, i32) {
    %c0_i32 = arith.constant 0 : i32
    %c0_i32_0 = arith.constant 0 : i32
    return %c0_i32, %arg0 : i32, i32
  }
  func.func @transform_2(%arg0: i32) -> (i32, i32, i32) {
    %c0_i32 = arith.constant 0 : i32
    %c0_i32_0 = arith.constant 0 : i32
    %c0_i32_1 = arith.constant 0 : i32
    return %arg0, %c0_i32, %c0_i32_0 : i32, i32, i32
  }
}

</mosaic_0001>

<llo_original>
// kernel: tpu_custom_call.1
$region0: #{tpu_custom_call.1}
  #allocation0 [shape = 'u32[]', space=smem, size = 0x4, offset = 0x4, fixed_abs, tag = 'smem constant byte address 0x4 - core index']
  #allocation1 [shape = 'u32[144,128]{1,0:T(1,128)}', space=vmem, size = 0x12000, scoped, tag = 'internal scratch']
  %s0 = inlined_call_operand.hbm [shape: s8[8,256], index: 0, kind: input, shape index: {}]
  %s1 = inlined_call_operand.hbm [shape: f32[8,256], index: 1, kind: input, shape index: {}]
  %s2 = inlined_call_operand.hbm [shape: f32[2,1,8], index: 2, kind: output, shape index: {}]
  %s3 = sld [smem:[#allocation0]]
  $region49: #{tpu_custom_call.1} parent=0
    _
  %s5 = ssub.s32 1, %s3
  %s6 = scalar_select 0, %s5, %s3
  $region1: #{tpu_custom_call.1} parent=0
    #allocation2 [shape = 'u8[2048]{0}', space=vmem, size = 0x800, scoped, tag = 'input window, operand 0']
    #allocation3 [shape = 's32[2]{0}', space=sflag, size = 0x8, scoped, tag = 'scoped memory for tpu_custom_call.1']
    #allocation4 [shape = 's32[2]{0}', space=sflag, size = 0x8, scoped, tag = 'scoped memory for tpu_custom_call.1']
    #allocation5 [shape = 'u8[8192]{0}', space=vmem, size = 0x2000, scoped, tag = 'input window, operand 1']
    #allocation6 [shape = 's32[2]{0}', space=sflag, size = 0x8, scoped, tag = 'scoped memory for tpu_custom_call.1']
    #allocation7 [shape = 'u8[1024]{0}', space=vmem, size = 0x400, scoped, tag = 'output window, operand 0']
    %7 = vsyncpa [#allocation3], 0
    %s8 = scalar_lea.sflag [#allocation3], 1
    %9 = vsyncpa %s8, 0
    %10 = vsyncpa [#allocation6], 0
    %s11 = scalar_lea.sflag [#allocation6], 1
    %12 = vsyncpa %s11, 0
    %13 = vsyncpa [#allocation4], 0
    %s14 = scalar_lea.sflag [#allocation4], 1
    %15 = vsyncpa %s14, 0
    loop: start=0, step=1, limit=4
    $region2: #{tpu_custom_call.1} parent=1 // loop_pre_header
      _
    $region3: #{tpu_custom_call.1} parent=1 // loop_header
      %s17 = sphi 0, %s21
      %p18 = scmp.ge.s32.totalorder %s17, 4
      %s27 = sphi 0, %s29
      %s30 = sphi 0, %s27
      %s31 = sphi 0, %s30
      %s47 = sphi 0, %s31
      %s53 = sphi 0, %s55
      %s56 = sphi 0, %s53
      %s57 = sphi 0, %s56
      %s73 = sphi 0, %s57
      %s79 = sphi 0, %s81
      %s82 = sphi 0, %s79
      %s83 = sphi 0, %s82
      %s99 = sphi 0, %s83
    $region4: #{tpu_custom_call.1} parent=1 // loop_header_branch
      %20 = sbr.rel (%p18) target = $region8
    $region5: #{tpu_custom_call.1} parent=1 // loop_body
      %s22 = ssub.s32 %s17, 1
      %s23 = ssub.s32 %s17, 2
      %s24 = sadd.s32 %s17, 1
      %s25 = ssub.s32 %s17, %s24
      %p26 = scmp.eq.s32.totalorder %s25, 0
      %s28 = sadd.s32 %s27, 1
      %s29 = scalar_select %p26, %s27, %s28
      %p32 = pneg %p26
      %p33 = scmp.eq.s32.totalorder %s17, 1
      %p34 = por %p32, %p33
      %p35 = scmp.ne.s32.totalorder %s27, %s30
      %p36 = scmp.eq.s32.totalorder %s17, 0
      %p37 = por %p35, %p36
      %p38 = scmp.ne.s32.totalorder %s27, %s30
      %p39 = scmp.eq.s32.totalorder %s22, 1
      %p40 = por %p38, %p39
      %p41 = scmp.ne.s32.totalorder %s30, %s31
      %p42 = scmp.eq.s32.totalorder %s22, 0
      %p43 = por %p41, %p42
      %p44 = scmp.ne.s32.totalorder %s30, %s31
      %p45 = scmp.eq.s32.totalorder %s23, 1
      %p46 = por %p44, %p45
      %p48 = scmp.ne.s32.totalorder %s31, %s47
      %p49 = scmp.eq.s32.totalorder %s23, 0
      %p50 = por %p48, %p49
      %s51 = ssub.s32 %s17, %s24
      %p52 = scmp.eq.s32.totalorder %s51, 0
      %s54 = sadd.s32 %s53, 1
      %s55 = scalar_select %p52, %s53, %s54
      %p58 = pneg %p52
      %p59 = scmp.eq.s32.totalorder %s17, 1
      %p60 = por %p58, %p59
      %p61 = scmp.ne.s32.totalorder %s53, %s56
      %p62 = scmp.eq.s32.totalorder %s17, 0
      %p63 = por %p61, %p62
      %p64 = scmp.ne.s32.totalorder %s53, %s56
      %p65 = scmp.eq.s32.totalorder %s22, 1
      %p66 = por %p64, %p65
      %p67 = scmp.ne.s32.totalorder %s56, %s57
      %p68 = scmp.eq.s32.totalorder %s22, 0
      %p69 = por %p67, %p68
      %p70 = scmp.ne.s32.totalorder %s56, %s57
      %p71 = scmp.eq.s32.totalorder %s23, 1
      %p72 = por %p70, %p71
      %p74 = scmp.ne.s32.totalorder %s57, %s73
      %p75 = scmp.eq.s32.totalorder %s23, 0
      %p76 = por %p74, %p75
      %s77 = ssub.s32 %s17, %s24
      %p78 = scmp.eq.s32.totalorder %s77, 0
      %s80 = sadd.s32 %s79, 1
      %s81 = scalar_select %p78, %s79, %s80
      %p84 = pneg %p78
      %p85 = scmp.eq.s32.totalorder %s17, 1
      %p86 = por %p84, %p85
      %p87 = scmp.ne.s32.totalorder %s79, %s82
      %p88 = scmp.eq.s32.totalorder %s17, 0
      %p89 = por %p87, %p88
      %p90 = scmp.ne.s32.totalorder %s79, %s82
      %p91 = scmp.eq.s32.totalorder %s22, 1
      %p92 = por %p90, %p91
      %p93 = scmp.ne.s32.totalorder %s82, %s83
      %p94 = scmp.eq.s32.totalorder %s22, 0
      %p95 = por %p93, %p94
      %p96 = scmp.ne.s32.totalorder %s82, %s83
      %p97 = scmp.eq.s32.totalorder %s23, 1
      %p98 = por %p96, %p97
      %p100 = scmp.ne.s32.totalorder %s83, %s99
      %p101 = scmp.eq.s32.totalorder %s23, 0
      %p102 = por %p100, %p101
      %p103 = scmp.le.s32.totalorder 1, %s17
      %p104 = scmp.lt.s32.totalorder %s17, 3
      %p105 = pnand %p103, %p104
      %p106 = pneg %p105
      // Predicated region
      $region9: #{tpu_custom_call.1} parent=5 // pred_check
        _
      $region10: #{tpu_custom_call.1} parent=5 // pred_check_branch
        %108 = sbr.rel (%p105) target = $region12
      $region11: #{tpu_custom_call.1} parent=5 // pred_region
        %s109 = ssub.s32 %s17, 1
      $region12: #{tpu_custom_call.1} parent=5 // pred_fallthru
        _
      %p110 = scmp.lt.s32.totalorder %s17, 2
      // Predicated region
      $region13: #{tpu_custom_call.1} parent=5 // pred_check
        %p111 = pneg %p110
      $region14: #{tpu_custom_call.1} parent=5 // pred_check_branch
        %113 = sbr.rel (%p111) target = $region16
      $region15: #{tpu_custom_call.1} parent=5 // pred_region
        // Predicated region
        $region17: #{tpu_custom_call.1} parent=15 // pred_check
          %p114 = pneg %p37
        $region18: #{tpu_custom_call.1} parent=15 // pred_check_branch
          %116 = sbr.rel (%p114) target = $region20
        $region19: #{tpu_custom_call.1} parent=15 // pred_region
          %s117 = sand.u32 %s27, 1
          %s118 = scalar_lea.sflag [#allocation3], %s117
          %s119 = sand.u32 %s27, 1
          %s120 = smul.addr %s119, 2
          %s121 = scalar_lea.vmem [#allocation2], %s120
          %s123 = ssub.s32 32, 32
          %124 = vsyncadd %s118, %s123
          %s125 = smul.addr %s17, 32
          %s126 = scalar_lea.hbm %s0, %s125
          %s128 = sshll.u32 %s121, 4
          %s129 = int_to_ptr.vmem [resolvable:$true] %s128
          %131 = dma.hbm_to_vmem [thread:$0]  %s126, 32, %s129, %s118
        $region20: #{tpu_custom_call.1} parent=15 // pred_fallthru
          _
        // Predicated region
        $region21: #{tpu_custom_call.1} parent=15 // pred_check
          %p132 = pneg %p63
        $region22: #{tpu_custom_call.1} parent=15 // pred_check_branch
          %134 = sbr.rel (%p132) target = $region24
        $region23: #{tpu_custom_call.1} parent=15 // pred_region
          %s135 = sand.u32 %s53, 1
          %s136 = scalar_lea.sflag [#allocation6], %s135
          %s137 = sand.u32 %s53, 1
          %s138 = smul.addr %s137, 8
          %s139 = scalar_lea.vmem [#allocation5], %s138
          %s141 = ssub.s32 128, 128
          %142 = vsyncadd %s136, %s141
          %s143 = smul.addr %s17, 128
          %s144 = scalar_lea.hbm %s1, %s143
          %s146 = sshll.u32 %s139, 4
          %s147 = int_to_ptr.vmem [resolvable:$true] %s146
          %149 = dma.hbm_to_vmem [thread:$0]  %s144, 128, %s147, %s136
        $region24: #{tpu_custom_call.1} parent=15 // pred_fallthru
          _
      $region16: #{tpu_custom_call.1} parent=5 // pred_fallthru
        _
      %p150 = scmp.le.s32.totalorder 1, %s17
      %p151 = scmp.lt.s32.totalorder %s17, 3
      %p152 = pnand %p150, %p151
      %p153 = pneg %p152
      // Predicated region
      $region25: #{tpu_custom_call.1} parent=5 // pred_check
        _
      $region26: #{tpu_custom_call.1} parent=5 // pred_check_branch
        %155 = sbr.rel (%p152) target = $region28
      $region27: #{tpu_custom_call.1} parent=5 // pred_region
        %s156 = ssub.s32 %s17, 1
        %s157 = sand.u32 %s30, 1
        %s158 = scalar_lea.sflag [#allocation3], %s157
        %s159 = sand.u32 %s30, 1
        %s160 = smul.addr %s159, 2
        %s161 = scalar_lea.vmem [#allocation2], %s160
        // Predicated region
        $region29: #{tpu_custom_call.1} parent=27 // pred_check
          %p162 = pneg %p43
        $region30: #{tpu_custom_call.1} parent=27 // pred_check_branch
          %164 = sbr.rel (%p162) target = $region32
        $region31: #{tpu_custom_call.1} parent=27 // pred_region
          %165 = dma.done %s158, 32
        $region32: #{tpu_custom_call.1} parent=27 // pred_fallthru
          _
        %s166 = sand.u32 %s56, 1
        %s167 = scalar_lea.sflag [#allocation6], %s166
        %s168 = sand.u32 %s56, 1
        %s169 = smul.addr %s168, 8
        %s170 = scalar_lea.vmem [#allocation5], %s169
        // Predicated region
        $region33: #{tpu_custom_call.1} parent=27 // pred_check
          %p171 = pneg %p69
        $region34: #{tpu_custom_call.1} parent=27 // pred_check_branch
          %173 = sbr.rel (%p171) target = $region36
        $region35: #{tpu_custom_call.1} parent=27 // pred_region
          %174 = dma.done %s167, 128
        $region36: #{tpu_custom_call.1} parent=27 // pred_fallthru
          _
        %s175 = sand.u32 %s30, 1
        %s176 = scalar_lea.sflag [#allocation3], %s175
        %s177 = sand.u32 %s30, 1
        %s178 = smul.addr %s177, 2
        %s179 = scalar_lea.vmem [#allocation2], %s178
        %p180 = pneg %p43
        %p181 = pneg %p40
        %s182 = sand.u32 %s56, 1
        %s183 = scalar_lea.sflag [#allocation6], %s182
        %s184 = sand.u32 %s56, 1
        %s185 = smul.addr %s184, 8
        %s186 = scalar_lea.vmem [#allocation5], %s185
        %p187 = pneg %p69
        %p188 = pneg %p66
        %p189 = pneg %p95
        %p190 = pneg %p92
        %s191 = sand.u32 %s82, 1
        %s192 = scalar_lea.sflag [#allocation4], %s191
        %s193 = sand.u32 %s82, 1
        %s194 = scalar_lea.vmem [#allocation7], %s193
        %v195 = vld [vmem:[%s170] sm:$0xff]
        %v196 = vld [vmem:[%s161] sm:$0x3]
        %v197 = vunpack.c.0.s8 %v196
        %vm198 = vcmp.gt.u32.totalorder %v197, 1
        %v199 = vsel %vm198, %v195, 0.0
        %200 = vadd.xlane.f32.xlu0 %v199
        %v201 = vpop.xlane.xlu0 %200
        %v203 = vlaneseq
        %v204 = vand.u32 %v203, 127
        %v205 = vlaneseq
        %v206 = vshrl.u32 %v205, 7
        %v207 = vsub.s32 %v204, %v206
        %v208 = vrot.slane %v201, %v207
        %vm210 = vcmask 57344
        %211 = vst.msk [vmem:[%s194] sm:$0x1] %vm210, %v208
        %s212 = sand.u32 %s82, 1
        %s213 = scalar_lea.sflag [#allocation4], %s212
        %s214 = sand.u32 %s82, 1
        %s215 = scalar_lea.vmem [#allocation7], %s214
        // Predicated region
        $region37: #{tpu_custom_call.1} parent=27 // pred_check
          %p216 = pneg %p92
        $region38: #{tpu_custom_call.1} parent=27 // pred_check_branch
          %218 = sbr.rel (%p216) target = $region40
        $region39: #{tpu_custom_call.1} parent=27 // pred_region
          %s220 = ssub.s32 16, 16
          %221 = vsyncadd %s213, %s220
          %s222 = smul.addr %s22, 16
          %s223 = scalar_lea.hbm %s2, %s222
          %s225 = sshll.u32 %s215, 4
          %s226 = int_to_ptr.vmem [resolvable:$true] %s225
          %228 = dma.vmem_to_hbm [thread:$0]  %s226, 16, %s223, %s213
        $region40: #{tpu_custom_call.1} parent=27 // pred_fallthru
          _
      $region28: #{tpu_custom_call.1} parent=5 // pred_fallthru
        _
      %p229 = scmp.le.s32.totalorder 2, %s17
      // Predicated region
      $region41: #{tpu_custom_call.1} parent=5 // pred_check
        %p230 = pneg %p229
      $region42: #{tpu_custom_call.1} parent=5 // pred_check_branch
        %232 = sbr.rel (%p230) target = $region44
      $region43: #{tpu_custom_call.1} parent=5 // pred_region
        %s233 = ssub.s32 %s17, 2
        // Predicated region
        $region45: #{tpu_custom_call.1} parent=43 // pred_check
          %p234 = pneg %p98
        $region46: #{tpu_custom_call.1} parent=43 // pred_check_branch
          %236 = sbr.rel (%p234) target = $region48
        $region47: #{tpu_custom_call.1} parent=43 // pred_region
          %s237 = sand.u32 %s83, 1
          %s238 = scalar_lea.sflag [#allocation4], %s237
          %s239 = sand.u32 %s83, 1
          %s240 = scalar_lea.vmem [#allocation7], %s239
          %241 = dma.done %s238, 16
        $region48: #{tpu_custom_call.1} parent=43 // pred_fallthru
          _
      $region44: #{tpu_custom_call.1} parent=5 // pred_fallthru
        _
    $region6: #{tpu_custom_call.1} parent=1 // loop_footer
      %s21 = sadd.s32 1, %s17
    $region7: #{tpu_custom_call.1} parent=1 // loop_footer_branch
      %16 = sbr.rel target = $region3
    $region8: #{tpu_custom_call.1} parent=1 // loop_exit
      _
    %242 = vsyncpa [#allocation3], 1
    %s243 = scalar_lea.sflag [#allocation3], 1
    %244 = vsyncpa %s243, 1
    %245 = vsyncpa [#allocation6], 1
    %s246 = scalar_lea.sflag [#allocation6], 1
    %247 = vsyncpa %s246, 1
    %248 = vsyncpa [#allocation4], 1
    %s249 = scalar_lea.sflag [#allocation4], 1
    %250 = vsyncpa %s249, 1

</llo_original>
